<compile_context>
chip_gen: v6e
topology: v6e:2x2x1
jax: 0.10.0
libtpu: 0.0.40
codegen_flags: <defaults>
</compile_context>

<pallas_src>
import functools

import jax
import jax.numpy as jnp
from jax.experimental import pallas as pl
from jax.experimental.pallas import tpu as pltpu


def _mlp_kernel(x_ref, w1_ref, b1_ref, w2_ref, b2_ref, w3_ref, b3_ref, o_ref):
    x = x_ref[...]                                   # (2, tb)  lane-dense
    w1 = w1_ref[...]                                 # (H, 2)

    # Layer 1: Linear(2, H) + ReLU.  K=2 contraction -> keep it off the MXU,
    # express as two rank-1 broadcast FMAs on the VPU.
    h1 = (w1[:, 0:1] * x[0:1, :]
          + w1[:, 1:2] * x[1:2, :]
          + b1_ref[...])                             # (H, tb)
    h1 = jnp.maximum(h1, 0.0)

    # Layer 2: Linear(H, H) + ReLU on the MXU: (H,H) @ (H,tb), f32 accumulate.
    # If w2 is stored as bf16 (l2_dtype), cast h1 to match so the MXU sees
    # native bf16 inputs (worth it only for H >= 128; default is f32).
    # Note: for H <= 64 a pure-VPU rank-1 path would shave MXU push/pop
    # latency; kept on the MXU so the identical kernel scales to H >= 128.
    w2 = w2_ref[...]
    h2 = jnp.dot(w2, h1.astype(w2.dtype),
                 preferred_element_type=jnp.float32) + b2_ref[...]
    h2 = jnp.maximum(h2, 0.0)                        # (H, tb)

    # Layer 3: Linear(H, 1).  N=1 matmul -> elementwise multiply + sublane
    # (XLU) reduction, producing the lane-dense (1, tb) output row directly.
    out = jnp.sum(w3_ref[...] * h2, axis=0, keepdims=True) + b3_ref[...]
    o_ref[...] = out.astype(o_ref.dtype)             # (1, tb) unmasked store


def _pick_tb(batch, target_tb):
    """Choose the batch (lane-axis) tile.

    * A multiple of 128 (lane width), unless a single block equal to the full
      batch dim is smaller (block dim == array dim is always a legal layout).
    * As large as possible up to `target_tb` so the ~0.35us per-grid-step
      overhead is amortized (default target 2048 keeps the (H, tb) f32
      activations register-resident on v5e; sweep 2048-8192 on v6e/v7x).
    * Capped so the grid has >= 2 steps when there is enough work, letting
      dimension_semantics=("parallel",) shard steps across v7x's 2 TCs.
    """
    target_tb = max(128, (int(target_tb) // 128) * 128)
    if batch <= 128:
        return batch                      # one full-extent block
    b128 = ((batch + 127) // 128) * 128
    tb = min(target_tb, b128)
    if b128 >= 256 and b128 <= tb:        # would be a 1-step grid: split it
        tb = min(tb, ((b128 // 2 + 127) // 128) * 128)
    return tb


def _const_spec(shape, index_map):
    """BlockSpec for an operand whose block never changes across the grid.

    Single-buffered (never re-fetched, so double-buffering is pure VMEM
    waste); falls back to the default pipeline mode on older jax.
    """
    try:
        return pl.BlockSpec(shape, index_map, pipeline_mode=pl.Buffered(1))
    except TypeError:
        return pl.BlockSpec(shape, index_map)


@functools.partial(jax.jit, static_argnames=("target_tb", "l2_dtype"))
def simple_feed_forward_fb(xt, w1, b1, w2, b2, w3, b3, *,
                           target_tb=2048, l2_dtype=jnp.float32):
    """Layout-native fused MLP forward.

    xt: (2, B) float32   -- activations in (features, batch) layout
    w1: (H, 2), b1: (H,)    (PyTorch nn.Linear layout: (out, in) / (out,))
    w2: (H, H), b2: (H,)
    w3: (1, H), b3: (1,)
    returns (1, B) float32  -- lane-dense output row

    No padding / extra HBM passes: the ragged batch tail is masked by Pallas
    via grid = pl.cdiv(B, tb).
    """
    B = xt.shape[1]
    H = w1.shape[0]
    tb = _pick_tb(B, target_tb)
    grid = (pl.cdiv(B, tb),)

    # Param plumbing (tiny; VMEM-resident after a single DMA each).
    w1f = w1.astype(jnp.float32)
    b1c = b1.reshape(H, 1).astype(jnp.float32)
    w2f = w2.astype(l2_dtype)
    b2c = b2.reshape(H, 1).astype(jnp.float32)
    w3c = w3.reshape(H, 1).astype(jnp.float32)
    b3c = b3.reshape(1, 1).astype(jnp.float32)

    const = lambda i: (0, 0)  # same block every step -> stays VMEM-resident

    flops = B * (2 * 2 * H + 2 * H * H + 2 * H)
    bytes_accessed = (B * (2 + 1) * 4                       # streamed in/out
                      + (2 * H + 3 * H + 1) * 4             # small params
                      + H * H * jnp.dtype(l2_dtype).itemsize)

    out_fb = pl.pallas_call(
        _mlp_kernel,
        out_shape=jax.ShapeDtypeStruct((1, B), jnp.float32),
        grid=grid,
        in_specs=[
            pl.BlockSpec((2, tb), lambda i: (0, i)),   # x tile (lane-dense)
            _const_spec((H, 2), const),                # w1
            _const_spec((H, 1), const),                # b1
            _const_spec((H, H), const),                # w2
            _const_spec((H, 1), const),                # b2
            _const_spec((H, 1), const),                # w3 (as a column)
            _const_spec((1, 1), const),                # b3
        ],
        out_specs=pl.BlockSpec((1, tb), lambda i: (0, i)),
        compiler_params=pltpu.CompilerParams(
            dimension_semantics=("parallel",),         # megacore on v7x
        ),
        cost_estimate=pl.CostEstimate(
            flops=int(flops),
            transcendentals=0,
            bytes_accessed=int(bytes_accessed),
        ),
    )(xt, w1f, b1c, w2f, b2c, w3c, b3c)
    return out_fb


def simple_feed_forward(x, w1, b1, w2, b2, w3, b3, *,
                        target_tb=2048, l2_dtype=jnp.float32):
    """PyTorch-layout compatibility entry point: x is (B, 2), returns (B, 1).

    Only the (B,2)->(2,B) transpose remains at this boundary (8 B/element); in
    production the upstream producer should emit the (2, B) layout directly
    and call simple_feed_forward_fb.  The output step is a free reshape of the
    kernel's lane-dense (1, B) row — no extra HBM pass, no padding.
    """
    out_fb = simple_feed_forward_fb(x.T, w1, b1, w2, b2, w3, b3,
                                    target_tb=target_tb, l2_dtype=l2_dtype)
    return out_fb.reshape(x.shape[0], 1)


def init_params(key, hidden_size):
    """Deterministic init matching PyTorch nn.Linear defaults, PyTorch layout."""
    ks = jax.random.split(key, 6)

    def linear(kw, kb, fan_in, fan_out):
        bound = 1.0 / jnp.sqrt(fan_in)
        w = jax.random.uniform(kw, (fan_out, fan_in), jnp.float32, -bound, bound)
        b = jax.random.uniform(kb, (fan_out,), jnp.float32, -bound, bound)
        return w, b

    w1, b1 = linear(ks[0], ks[1], 2, hidden_size)
    w2, b2 = linear(ks[2], ks[3], hidden_size, hidden_size)
    w3, b3 = linear(ks[4], ks[5], hidden_size, 1)
    return w1, b1, w2, b2, w3, b3


if __name__ == "__main__":
    hidden_size = 32
    batch = 8  # NOTE: at B~8 a standalone pallas_call is pure dispatch
    #            overhead; small here only for the smoke test.

    key = jax.random.PRNGKey(0)
    k_x, k_p = jax.random.split(key)
    x = jax.random.normal(k_x, (batch, 2), jnp.float32)
    params = init_params(k_p, hidden_size)
    w1, b1, w2, b2, w3, b3 = params

    def ref_fn(xv):  # pure-JAX reference (PyTorch semantics: y = x @ W.T + b)
        h1 = jnp.maximum(xv @ w1.T + b1, 0.0)
        h2 = jnp.maximum(h1 @ w2.T + b2, 0.0)
        return h2 @ w3.T + b3

    out = jax.block_until_ready(simple_feed_forward(x, *params))
    ref = ref_fn(x)
    assert out.shape == (batch, 1), out.shape
    assert jnp.allclose(out, ref, atol=1e-5, rtol=1e-5), float(
        jnp.max(jnp.abs(out - ref)))

    # Exercise the multi-step grid + ragged-tail masking path (no wrapper pad).
    x2 = jax.random.normal(k_x, (300, 2), jnp.float32)
    out2 = jax.block_until_ready(simple_feed_forward(x2, *params))
    ref2 = ref_fn(x2)
    assert out2.shape == (300, 1), out2.shape
    assert jnp.allclose(out2, ref2, atol=1e-5, rtol=1e-5), float(
        jnp.max(jnp.abs(out2 - ref2)))

    print("KERNEL_OK")
</pallas_src>

<mosaic_0001>
module attributes {stable_mosaic.version = 11 : i64} {
  func.func @_mlp_kernel(%arg0: i32, %arg1: memref<2x8xf32, #tpu.memory_space<vmem>>, %arg2: memref<32x2xf32, #tpu.memory_space<vmem>>, %arg3: memref<32x1xf32, #tpu.memory_space<vmem>>, %arg4: memref<32x32xf32, #tpu.memory_space<vmem>>, %arg5: memref<32x1xf32, #tpu.memory_space<vmem>>, %arg6: memref<32x1xf32, #tpu.memory_space<vmem>>, %arg7: memref<1x1xf32, #tpu.memory_space<vmem>>, %arg8: memref<1x8xf32, #tpu.memory_space<vmem>>) attributes {dimension_semantics = [#tpu.dimension_semantics<parallel>], iteration_bounds = array<i64: 1>, scalar_prefetch = 0 : i64, scratch_operands = 0 : i64, tpu.core_type = #tpu.core_type<tc>, window_params = [{transform_indices = @transform_0, window_bounds = array<i64: 2, 8>}, {pipeline_mode = #tpu.pipeline_mode<synchronous>, transform_indices = @transform_1, window_bounds = array<i64: 32, 2>}, {pipeline_mode = #tpu.pipeline_mode<synchronous>, transform_indices = @transform_2, window_bounds = array<i64: 32, 1>}, {pipeline_mode = #tpu.pipeline_mode<synchronous>, transform_indices = @transform_3, window_bounds = array<i64: 32, 32>}, {pipeline_mode = #tpu.pipeline_mode<synchronous>, transform_indices = @transform_4, window_bounds = array<i64: 32, 1>}, {pipeline_mode = #tpu.pipeline_mode<synchronous>, transform_indices = @transform_5, window_bounds = array<i64: 32, 1>}, {pipeline_mode = #tpu.pipeline_mode<synchronous>, transform_indices = @transform_6, window_bounds = array<i64: 1, 1>}, {transform_indices = @transform_7, window_bounds = array<i64: 1, 8>}]} {
    %c0 = arith.constant 0 : index
    %c0_0 = arith.constant 0 : index
    %0 = vector.load %arg1[%c0, %c0_0] : memref<2x8xf32, #tpu.memory_space<vmem>>, vector<2x8xf32>
    %c0_1 = arith.constant 0 : index
    %c0_2 = arith.constant 0 : index
    %1 = vector.load %arg2[%c0_1, %c0_2] : memref<32x2xf32, #tpu.memory_space<vmem>>, vector<32x2xf32>
    %2 = vector.extract_strided_slice %1 {offsets = [0, 0], sizes = [32, 1], strides = [1, 1]} : vector<32x2xf32> to vector<32x1xf32>
    %3 = vector.extract_strided_slice %0 {offsets = [0, 0], sizes = [1, 8], strides = [1, 1]} : vector<2x8xf32> to vector<1x8xf32>
    %4 = vector.broadcast %2 : vector<32x1xf32> to vector<32x8xf32>
    %5 = vector.broadcast %3 : vector<1x8xf32> to vector<32x8xf32>
    %6 = arith.mulf %4, %5 : vector<32x8xf32>
    %7 = vector.extract_strided_slice %1 {offsets = [0, 1], sizes = [32, 1], strides = [1, 1]} : vector<32x2xf32> to vector<32x1xf32>
    %8 = vector.extract_strided_slice %0 {offsets = [1, 0], sizes = [1, 8], strides = [1, 1]} : vector<2x8xf32> to vector<1x8xf32>
    %9 = vector.broadcast %7 : vector<32x1xf32> to vector<32x8xf32>
    %10 = vector.broadcast %8 : vector<1x8xf32> to vector<32x8xf32>
    %11 = arith.mulf %9, %10 : vector<32x8xf32>
    %12 = arith.addf %6, %11 : vector<32x8xf32>
    %c0_3 = arith.constant 0 : index
    %c0_4 = arith.constant 0 : index
    %13 = vector.load %arg3[%c0_3, %c0_4] : memref<32x1xf32, #tpu.memory_space<vmem>>, vector<32x1xf32>
    %14 = vector.broadcast %13 : vector<32x1xf32> to vector<32x8xf32>
    %15 = arith.addf %12, %14 : vector<32x8xf32>
    %cst = arith.constant 0.000000e+00 : f32
    %16 = vector.broadcast %cst : f32 to vector<32x8xf32>
    %17 = arith.maximumf %15, %16 : vector<32x8xf32>
    %c0_5 = arith.constant 0 : index
    %c0_6 = arith.constant 0 : index
    %18 = vector.load %arg4[%c0_5, %c0_6] : memref<32x32xf32, #tpu.memory_space<vmem>>, vector<32x32xf32>
    %cst_7 = arith.constant dense<0.000000e+00> : vector<32x8xf32>
    %19 = tpu.matmul %18, %17, %cst_7 {dimension_numbers = #tpu.dot_dimension_numbers<[1], [0], [0], [1], [0, 0, 1, 1], [], []>} : vector<32x32xf32>, vector<32x8xf32>, vector<32x8xf32> -> vector<32x8xf32>
    %c0_8 = arith.constant 0 : index
    %c0_9 = arith.constant 0 : index
    %20 = vector.load %arg5[%c0_8, %c0_9] : memref<32x1xf32, #tpu.memory_space<vmem>>, vector<32x1xf32>
    %21 = vector.broadcast %20 : vector<32x1xf32> to vector<32x8xf32>
    %22 = arith.addf %19, %21 : vector<32x8xf32>
    %cst_10 = arith.constant 0.000000e+00 : f32
    %23 = vector.broadcast %cst_10 : f32 to vector<32x8xf32>
    %24 = arith.maximumf %22, %23 : vector<32x8xf32>
    %c0_11 = arith.constant 0 : index
    %c0_12 = arith.constant 0 : index
    %25 = vector.load %arg6[%c0_11, %c0_12] : memref<32x1xf32, #tpu.memory_space<vmem>>, vector<32x1xf32>
    %26 = vector.broadcast %25 : vector<32x1xf32> to vector<32x8xf32>
    %27 = arith.mulf %26, %24 : vector<32x8xf32>
    %cst_13 = arith.constant dense<0.000000e+00> : vector<8xf32>
    %28 = vector.multi_reduction <add>, %27, %cst_13 [0] : vector<32x8xf32> to vector<8xf32>
    %29 = vector.shape_cast %28 : vector<8xf32> to vector<1x8xf32>
    %c0_14 = arith.constant 0 : index
    %c0_15 = arith.constant 0 : index
    %30 = vector.load %arg7[%c0_14, %c0_15] : memref<1x1xf32, #tpu.memory_space<vmem>>, vector<1x1xf32>
    %31 = vector.broadcast %30 : vector<1x1xf32> to vector<1x8xf32>
    %32 = arith.addf %29, %31 : vector<1x8xf32>
    %c0_16 = arith.constant 0 : index
    %c0_17 = arith.constant 0 : index
    %33 = vector.load %arg8[%c0_16, %c0_17] : memref<1x8xf32, #tpu.memory_space<vmem>>, vector<1x8xf32>
    tpu.vector_store %arg8[%c0_16, %c0_17], %32 {strides = array<i32>} : memref<1x8xf32, #tpu.memory_space<vmem>>, vector<1x8xf32>,
    return
  }
  func.func @transform_0(%arg0: i32) -> (i32, i32) {
    %c0_i32 = arith.constant 0 : i32
    %c0_i32_0 = arith.constant 0 : i32
    return %c0_i32, %arg0 : i32, i32
  }
  func.func @transform_1(%arg0: i32) -> (i32, i32) {
    %c0_i32 = arith.constant 0 : i32
    %c0_i32_0 = arith.constant 0 : i32
    %c0_i32_1 = arith.constant 0 : i32
    return %c0_i32, %c0_i32_0 : i32, i32
  }
  func.func @transform_2(%arg0: i32) -> (i32, i32) {
    %c0_i32 = arith.constant 0 : i32
    %c0_i32_0 = arith.constant 0 : i32
    %c0_i32_1 = arith.constant 0 : i32
    return %c0_i32, %c0_i32_0 : i32, i32
  }
  func.func @transform_3(%arg0: i32) -> (i32, i32) {
    %c0_i32 = arith.constant 0 : i32
    %c0_i32_0 = arith.constant 0 : i32
    %c0_i32_1 = arith.constant 0 : i32
    return %c0_i32, %c0_i32_0 : i32, i32
  }
  func.func @transform_4(%arg0: i32) -> (i32, i32) {
    %c0_i32 = arith.constant 0 : i32
    %c0_i32_0 = arith.constant 0 : i32
    %c0_i32_1 = arith.constant 0 : i32
    return %c0_i32, %c0_i32_0 : i32, i32
  }
  func.func @transform_5(%arg0: i32) -> (i32, i32) {
    %c0_i32 = arith.constant 0 : i32
    %c0_i32_0 = arith.constant 0 : i32
    %c0_i32_1 = arith.constant 0 : i32
    return %c0_i32, %c0_i32_0 : i32, i32
  }
  func.func @transform_6(%arg0: i32) -> (i32, i32) {
    %c0_i32 = arith.constant 0 : i32
    %c0_i32_0 = arith.constant 0 : i32
    %c0_i32_1 = arith.constant 0 : i32
    return %c0_i32, %c0_i32_0 : i32, i32
  }
  func.func @transform_7(%arg0: i32) -> (i32, i32) {
    %c0_i32 = arith.constant 0 : i32
    %c0_i32_0 = arith.constant 0 : i32
    return %c0_i32, %arg0 : i32, i32
  }
}

</mosaic_0001>

<llo_original>
// kernel: simple_feed_forward_fb.1
$region0: #{simple_feed_forward_fb.1}
  #allocation0 [shape = 'u32[]', space=smem, size = 0x4, offset = 0x4, fixed_abs, tag = 'smem constant byte address 0x4 - core index']
  #allocation1 [shape = 'u32[144,128]{1,0:T(1,128)}', space=vmem, size = 0x12000, scoped, tag = 'internal scratch']
  #allocation2 [shape = 'f32[1,1]{1,0:T(1,128)S(1)}', space=vmem, size = 0x200, scoped, tag = 'scoped memory for simple_feed_forward_fb.1']
  %s0 = inlined_call_operand.vmem [shape: f32[2,8], index: 0, kind: input, shape index: {}]
  %s1 = inlined_call_operand.vmem [shape: f32[32,2], index: 1, kind: input, shape index: {}]
  %s2 = inlined_call_operand.vmem [shape: f32[32,1], index: 2, kind: input, shape index: {}]
  %s3 = inlined_call_operand.vmem [shape: f32[32,32], index: 3, kind: input, shape index: {}]
  %s4 = inlined_call_operand.vmem [shape: f32[32,1], index: 4, kind: input, shape index: {}]
  %s5 = inlined_call_operand.vmem [shape: f32[32,1], index: 5, kind: input, shape index: {}]
  %s6 = inlined_call_operand.<no memory space> [shape: f32[1,1], index: 6, kind: input, shape index: {}]
  %s7 = inlined_call_operand.hbm [shape: f32[1,8], index: 7, kind: output, shape index: {}]
  %s8 = sld [smem:[#allocation0]]
  $region38: #{simple_feed_forward_fb.1} parent=0
    _
  %s10 = ssub.s32 1, %s8
  %s11 = scalar_select 0, %s10, %s8
  %v12 = vstv %s6
  %13 = vst [vmem:[#allocation2] sm:$0x1] %v12
  $region1: #{simple_feed_forward_fb.1} parent=0
    #allocation3 [shape = 'u8[512]{0}', space=vmem, size = 0x400, scoped, tag = 'output window, operand 0, single buffered']
    #allocation4 [shape = 's32[1]{0}', space=sflag, size = 0x4, scoped, tag = 'scoped memory for simple_feed_forward_fb.1']
    %14 = vsyncpa [#allocation4], 0
    // Predicated region
    $region2: #{simple_feed_forward_fb.1} parent=1 // pred_check
      _
    $region3: #{simple_feed_forward_fb.1} parent=1 // pred_check_branch
      %16 = sbr.rel (0) target = $region5
    $region4: #{simple_feed_forward_fb.1} parent=1 // pred_region
      _
    $region5: #{simple_feed_forward_fb.1} parent=1 // pred_fallthru
      _
    // Predicated region
    $region6: #{simple_feed_forward_fb.1} parent=1 // pred_check
      _
    $region7: #{simple_feed_forward_fb.1} parent=1 // pred_check_branch
      %18 = sbr.rel (0) target = $region9
    $region8: #{simple_feed_forward_fb.1} parent=1 // pred_region
      _
    $region9: #{simple_feed_forward_fb.1} parent=1 // pred_fallthru
      _
    // Predicated region
    $region10: #{simple_feed_forward_fb.1} parent=1 // pred_check
      _
    $region11: #{simple_feed_forward_fb.1} parent=1 // pred_check_branch
      %20 = sbr.rel (0) target = $region13
    $region12: #{simple_feed_forward_fb.1} parent=1 // pred_region
      _
    $region13: #{simple_feed_forward_fb.1} parent=1 // pred_fallthru
      _
    // Predicated region
    $region14: #{simple_feed_forward_fb.1} parent=1 // pred_check
      _
    $region15: #{simple_feed_forward_fb.1} parent=1 // pred_check_branch
      %22 = sbr.rel (0) target = $region17
    $region16: #{simple_feed_forward_fb.1} parent=1 // pred_region
      _
    $region17: #{simple_feed_forward_fb.1} parent=1 // pred_fallthru
      _
    // Predicated region
    $region18: #{simple_feed_forward_fb.1} parent=1 // pred_check
      _
    $region19: #{simple_feed_forward_fb.1} parent=1 // pred_check_branch
      %24 = sbr.rel (0) target = $region21
    $region20: #{simple_feed_forward_fb.1} parent=1 // pred_region
      _
    $region21: #{simple_feed_forward_fb.1} parent=1 // pred_fallthru
      _
    // Predicated region
    $region22: #{simple_feed_forward_fb.1} parent=1 // pred_check
      _
    $region23: #{simple_feed_forward_fb.1} parent=1 // pred_check_branch
      %26 = sbr.rel (0) target = $region25
    $region24: #{simple_feed_forward_fb.1} parent=1 // pred_region
      _
    $region25: #{simple_feed_forward_fb.1} parent=1 // pred_fallthru
      _
    // Predicated region
    $region26: #{simple_feed_forward_fb.1} parent=1 // pred_check
      _
    $region27: #{simple_feed_forward_fb.1} parent=1 // pred_check_branch
      %28 = sbr.rel (0) target = $region29
    $region28: #{simple_feed_forward_fb.1} parent=1 // pred_region
      _
    $region29: #{simple_feed_forward_fb.1} parent=1 // pred_fallthru
      _
    %v29 = vld [vmem:[%s0] sm:$0x3]
    %v30 = vld [vmem:[%s1] sm:$0xff]
    %v31 = vld [vmem:[%s1 + $0x8] sm:$0xff]
    %v32 = vld [vmem:[%s1 + $0x10] sm:$0xff]
    %v33 = vld [vmem:[%s1 + $0x18] sm:$0xff]
    %35 = vset.pattern.permute.xlu0 0
    %36 = vperm.xlu0 %35, %v30
    %v37 = vpop.permute.xlu0 %36
    %40 = vset.pattern.permute.xlu0 0
    %41 = vperm.xlu0 %40, %v31
    %v42 = vpop.permute.xlu0 %41
    %45 = vset.pattern.permute.xlu0 0
    %46 = vperm.xlu0 %45, %v32
    %v47 = vpop.permute.xlu0 %46
    %50 = vset.pattern.permute.xlu0 0
    %51 = vperm.xlu0 %50, %v33
    %v52 = vpop.permute.xlu0 %51
    %v54 = vlaneseq
    %v55 = vshrl.u32 %v54, 7
    %v56 = vsub.s32 0, %v55
    %v57 = vrot.slane %v29, %v56
    %v58 = vmul.f32 %v37, %v57
    %v59 = vmul.f32 %v42, %v57
    %v60 = vmul.f32 %v47, %v57
    %v61 = vmul.f32 %v52, %v57
    %62 = vset.pattern.permute.xlu0 1
    %63 = vperm.xlu0 %62, %v30
    %v64 = vpop.permute.xlu0 %63
    %66 = vset.pattern.permute.xlu0 1
    %67 = vperm.xlu0 %66, %v31
    %v68 = vpop.permute.xlu0 %67
    %70 = vset.pattern.permute.xlu0 1
    %71 = vperm.xlu0 %70, %v32
    %v72 = vpop.permute.xlu0 %71
    %74 = vset.pattern.permute.xlu0 1
    %75 = vperm.xlu0 %74, %v33
    %v76 = vpop.permute.xlu0 %75
    %v78 = vlaneseq
    %v79 = vshrl.u32 %v78, 7
    %v80 = vsub.s32 1, %v79
    %v81 = vrot.slane %v29, %v80
    %v82 = vmul.f32 %v64, %v81
    %v83 = vmul.f32 %v68, %v81
    %v84 = vmul.f32 %v72, %v81
    %v85 = vmul.f32 %v76, %v81
    %v86 = vadd.f32 %v58, %v82
    %v87 = vadd.f32 %v59, %v83
    %v88 = vadd.f32 %v60, %v84
    %v89 = vadd.f32 %v61, %v85
    %v90 = vld [vmem:[%s2] sm:$0xff]
    %v91 = vld [vmem:[%s2 + $0x8] sm:$0xff]
    %v92 = vld [vmem:[%s2 + $0x10] sm:$0xff]
    %v93 = vld [vmem:[%s2 + $0x18] sm:$0xff]
    %95 = vset.pattern.permute.xlu0 0
    %96 = vperm.xlu0 %95, %v90
    %v97 = vpop.permute.xlu0 %96
    %100 = vset.pattern.permute.xlu0 0
    %101 = vperm.xlu0 %100, %v91
    %v102 = vpop.permute.xlu0 %101
    %105 = vset.pattern.permute.xlu0 0
    %106 = vperm.xlu0 %105, %v92
    %v107 = vpop.permute.xlu0 %106
    %110 = vset.pattern.permute.xlu0 0
    %111 = vperm.xlu0 %110, %v93
    %v112 = vpop.permute.xlu0 %111
    %v114 = vadd.f32 %v86, %v97
    %v115 = vadd.f32 %v87, %v102
    %v116 = vadd.f32 %v88, %v107
    %v117 = vadd.f32 %v89, %v112
    %v118 = vmax.f32 %v114, 0.0
    %v119 = vmax.f32 %v115, 0.0
    %v120 = vmax.f32 %v116, 0.0
    %v121 = vmax.f32 %v117, 0.0
    %v122 = vld [vmem:[%s3] sm:$0xff]
    %v123 = vld [vmem:[%s3 + $0x8] sm:$0xff]
    %v124 = vld [vmem:[%s3 + $0x10] sm:$0xff]
    %v125 = vld [vmem:[%s3 + $0x18] sm:$0xff]
    %v126 = vld [vmem:[%s4] sm:$0xff]
    %v127 = vld [vmem:[%s4 + $0x8] sm:$0xff]
    %v128 = vld [vmem:[%s4 + $0x10] sm:$0xff]
    %v129 = vld [vmem:[%s4 + $0x18] sm:$0xff]
    %131 = vset.pattern.permute.xlu0 0
    %132 = vperm.xlu0 %131, %v126
    %v133 = vpop.permute.xlu0 %132
    %136 = vset.pattern.permute.xlu0 0
    %137 = vperm.xlu0 %136, %v127
    %v138 = vpop.permute.xlu0 %137
    %141 = vset.pattern.permute.xlu0 0
    %142 = vperm.xlu0 %141, %v128
    %v143 = vpop.permute.xlu0 %142
    %146 = vset.pattern.permute.xlu0 0
    %147 = vperm.xlu0 %146, %v129
    %v148 = vpop.permute.xlu0 %147
    %vm150 = vcmask 261120
    %v152 = vsel %vm150, %v122, 0
    %v155 = vsel %vm150, %v123, 0
    %v158 = vsel %vm150, %v124, 0
    %v161 = vsel %vm150, %v125, 0
    %163 = vmatprep.subr.mxu0 0.0
    %164 = vmatpush1.msra.mxu0 0.0
    %165 = vmatprep.subr.mxu0 0.0
    %166 = vmatpush1.msra.mxu0 0.0
    %167 = vmatprep.subr.mxu0 0.0
    %168 = vmatpush1.msra.mxu0 0.0
    %169 = vmatprep.subr.mxu0 0.0
    %170 = vmatpush1.msra.mxu0 0.0
    %171 = vmatprep.subr.mxu0 0.0
    %172 = vmatpush1.msra.mxu0 0.0
    %173 = vmatprep.subr.mxu0 0.0
    %174 = vmatpush1.msra.mxu0 0.0
    %175 = vmatprep.subr.mxu0 0.0
    %176 = vmatpush1.msra.mxu0 0.0
    %177 = vmatprep.subr.mxu0 0.0
    %178 = vmatpush1.msra.mxu0 0.0
    %179 = vmatprep.subr.mxu0 0.0
    %180 = vmatpush1.msra.mxu0 0.0
    %181 = vmatprep.subr.mxu0 0.0
    %182 = vmatpush1.msra.mxu0 0.0
    %183 = vmatprep.subr.mxu0 0.0
    %184 = vmatpush1.msra.mxu0 0.0
    %185 = vmatprep.subr.mxu0 0.0
    %186 = vmatpush1.msra.mxu0 0.0
    %187 = vmatprep.subr.mxu0 0.0
    %188 = vmatpush1.msra.mxu0 %v121
    %189 = vmatprep.subr.mxu0 0.0
    %190 = vmatpush1.msra.mxu0 %v120
    %191 = vmatprep.subr.mxu0 0.0
    %192 = vmatpush1.msra.mxu0 %v119
    %193 = vmatprep.subr.mxu0 0.0
    %194 = vmatpush1.msra.mxu0 %v118
    %195 = vmatprep.subr.mxu0 0.0
    %196 = vmatpush2.msra.mxu0 0.0
    %197 = vmatprep.subr.mxu0 0.0
    %198 = vmatpush2.msra.mxu0 0.0
    %199 = vmatprep.subr.mxu0 0.0
    %200 = vmatpush2.msra.mxu0 0.0
    %201 = vmatprep.subr.mxu0 0.0
    %202 = vmatpush2.msra.mxu0 0.0
    %203 = vmatprep.subr.mxu0 0.0
    %204 = vmatpush2.msra.mxu0 0.0
    %205 = vmatprep.subr.mxu0 0.0
    %206 = vmatpush2.msra.mxu0 0.0
    %207 = vmatprep.subr.mxu0 0.0
    %208 = vmatpush2.msra.mxu0 0.0
    %209 = vmatprep.subr.mxu0 0.0
    %210 = vmatpush2.msra.mxu0 0.0
    %211 = vmatprep.subr.mxu0 0.0
    %212 = vmatpush2.msra.mxu0 0.0
    %213 = vmatprep.subr.mxu0 0.0
    %214 = vmatpush2.msra.mxu0 0.0
    %215 = vmatprep.subr.mxu0 0.0
    %216 = vmatpush2.msra.mxu0 0.0
    %217 = vmatprep.subr.mxu0 0.0
    %218 = vmatpush2.msra.mxu0 0.0
    %219 = vmatprep.subr.mxu0 0.0
    %220 = vmatpush2.msra.mxu0 0.0
    %221 = vmatprep.subr.mxu0 0.0
    %222 = vmatpush2.msra.mxu0 0.0
    %223 = vmatprep.subr.mxu0 0.0
    %224 = vmatpush2.msra.mxu0 0.0
    %225 = vmatprep.subr.mxu0 0.0
    %226 = vmatpush2.msra.mxu0 0.0
    %227 = vmatprep.mubr.f32.mxu0 0.0
    %228 = vmatmul.mubr.f32.gmra.mxu0 %v152
    %v229 = vpop.f32.mrf.mxu0
    %v230 = vadd.f32 %v133, %v229
    %v231 = vpop.f32.mrf.mxu0
    %232 = vmatprep.mubr.f32.mxu0 0.0
    %233 = vmatmul.mubr.f32.gmra.mxu0 %v155
    %v234 = vpop.f32.mrf.mxu0
    %v235 = vadd.f32 %v138, %v234
    %v236 = vpop.f32.mrf.mxu0
    %237 = vmatprep.mubr.f32.mxu0 0.0
    %238 = vmatmul.mubr.f32.gmra.mxu0 %v158
    %v239 = vpop.f32.mrf.mxu0
    %v240 = vadd.f32 %v143, %v239
    %v241 = vpop.f32.mrf.mxu0
    %242 = vmatprep.mubr.f32.mxu0 0.0
    %243 = vmatmul.mubr.f32.gmra.mxu0 %v161
    %v244 = vpop.f32.mrf.mxu0
    %v245 = vadd.f32 %v148, %v244
    %v246 = vpop.f32.mrf.mxu0
    %247 = vdwg.mxu0
    %v248 = vmax.f32 %v230, 0.0
    %v249 = vmax.f32 %v235, 0.0
    %v250 = vmax.f32 %v240, 0.0
    %v251 = vmax.f32 %v245, 0.0
    %v252 = vld [vmem:[%s5] sm:$0xff]
    %v253 = vld [vmem:[%s5 + $0x8] sm:$0xff]
    %v254 = vld [vmem:[%s5 + $0x10] sm:$0xff]
    %v255 = vld [vmem:[%s5 + $0x18] sm:$0xff]
    %257 = vset.pattern.permute.xlu0 0
    %258 = vperm.xlu0 %257, %v252
    %v259 = vpop.permute.xlu0 %258
    %262 = vset.pattern.permute.xlu0 0
    %263 = vperm.xlu0 %262, %v253
    %v264 = vpop.permute.xlu0 %263
    %267 = vset.pattern.permute.xlu0 0
    %268 = vperm.xlu0 %267, %v254
    %v269 = vpop.permute.xlu0 %268
    %272 = vset.pattern.permute.xlu0 0
    %273 = vperm.xlu0 %272, %v255
    %v274 = vpop.permute.xlu0 %273
    %v276 = vmul.f32 %v259, %v248
    %v277 = vmul.f32 %v264, %v249
    %v278 = vmul.f32 %v269, %v250
    %v279 = vmul.f32 %v274, %v251
    %vm280 = vcmask 64512
    %v281 = vsel %vm280, %v276, 0.0
    %v282 = vsel %vm280, %v277, 0.0
    %v283 = vadd.f32 %v281, %v282
    %v284 = vsel %vm280, %v278, 0.0
    %v285 = vadd.f32 %v283, %v284
    %v286 = vsel %vm280, %v279, 0.0
    %v287 = vadd.f32 %v285, %v286
    %v288 = vrot.slane %v287, 4
    %v289 = vadd.f32 %v287, %v288
    %v290 = vrot.slane %v289, 2
    %v291 = vadd.f32 %v289, %v290
    %v292 = vrot.slane %v291, 1
    %v293 = vadd.f32 %v291, %v292
    %v294 = vld [vmem:[#allocation2] sm:$0x1]
    %296 = vset.pattern.permute.xlu0 0
    %297 = vperm.xlu0 %296, %v294
    %v298 = vpop.permute.xlu0 %297
    %v300 = vlaneseq
    %v301 = vshrl.u32 %v300, 7
    %v302 = vsub.s32 0, %v301
    %v303 = vrot.slane %v298, %v302
    %v304 = vadd.f32 %v293, %v303
    %vm305 = vcmask 57344
    %306 = vst.msk [vmem:[#allocation3] sm:$0x1] %vm305, %v304
    // Predicated region
    $region30: #{simple_feed_forward_fb.1} parent=1 // pred_check
      _
    $region31: #{simple_feed_forward_fb.1} parent=1 // pred_check_branch
      %308 = sbr.rel (0) target = $region33
    $region32: #{simple_feed_forward_fb.1} parent=1 // pred_region
      %s310 = ssub.s32 16, 16
      %311 = vsyncadd [#allocation4], %s310
      %s313 = sshll.u32 [#allocation3], 4
      %s314 = int_to_ptr.vmem [resolvable:$true] %s313
      %316 = dma.vmem_to_hbm [thread:$0]  %s314, 16, %s7, [#allocation4]
    $region33: #{simple_feed_forward_fb.1} parent=1 // pred_fallthru
      _
    // Predicated region
    $region34: #{simple_feed_forward_fb.1} parent=1 // pred_check
      _
    $region35: #{simple_feed_forward_fb.1} parent=1 // pred_check_branch
      %318 = sbr.rel (0) target = $region37
    $region36: #{simple_feed_forward_fb.1} parent=1 // pred_region
      %319 = dma.done [#allocation4], 16
    $region37: #{simple_feed_forward_fb.1} parent=1 // pred_fallthru
      _
    %320 = vsyncpa [#allocation4], 1

</llo_original>
